<compile_context>
chip_gen: v6e
topology: v6e:2x2x1
jax: 0.10.0
libtpu: 0.0.40
codegen_flags: <defaults>
</compile_context>

<pallas_src>
import functools

import jax
import jax.numpy as jnp
from jax.experimental import pallas as pl
from jax.experimental.pallas import tpu as pltpu

_LANES = 128


def _lane_partial_sum(x, t_hw):
    """(rows, t_hw) f32 -> (rows, 128) partial sums.

    Pure VPU adds over aligned 128-lane chunks when t_hw is a multiple of 128
    (the streaming case); odd trailing extents (small single-step inputs only)
    fall back to one lane reduction placed in lane 0.
    """
    if t_hw % _LANES == 0:
        total = x[:, 0:_LANES]
        for j in range(1, t_hw // _LANES):
            total = total + x[:, j * _LANES:(j + 1) * _LANES]
        return total
    rows = x.shape[0]
    s = jnp.sum(x, axis=-1, keepdims=True)                       # (rows, 1)
    lane = jax.lax.broadcasted_iota(jnp.int32, (rows, _LANES), 1)
    return jnp.where(lane == 0, s, 0.0)


def _pool_sum_kernel(x_ref, o_ref, acc_ref, *, hw, t_hw, clamp_eps):
    # x_ref:   (TR, T_HW) block of the (N*C, H*W) input
    # o_ref:   (TR, 1) per-row mean (f32), resident across the HW axis
    # acc_ref: (TR, 128) f32 lane-wide accumulator scratch
    k = pl.program_id(1)
    num_k = pl.num_programs(1)

    @pl.when(k == 0)
    def _():
        acc_ref[...] = jnp.zeros_like(acc_ref)

    # clamp(min=eps) in f32; loaded once, shared by both branches below.
    x = jnp.maximum(x_ref[...].astype(jnp.float32), clamp_eps)

    if hw % t_hw != 0:
        # Only the final HW tile has padded lanes -> mask only there.
        @pl.when(k == num_k - 1)
        def _():
            lane = jax.lax.broadcasted_iota(jnp.int32, x.shape, 1)
            rem = hw - k * t_hw
            acc_ref[...] += _lane_partial_sum(
                jnp.where(lane < rem, x, 0.0), t_hw)

        @pl.when(k != num_k - 1)
        def _():
            acc_ref[...] += _lane_partial_sum(x, t_hw)
    else:
        acc_ref[...] += _lane_partial_sum(x, t_hw)

    @pl.when(k == num_k - 1)
    def _():
        # Single cross-lane reduction + mean scale, once per row block.
        total = jnp.sum(acc_ref[...], axis=-1, keepdims=True)    # (TR, 1)
        o_ref[...] = (total * (1.0 / hw)).astype(o_ref.dtype)


def _cdiv(a, b):
    return -(-a // b)


def _round_up(a, b):
    return _cdiv(a, b) * b


def _choose_tiles(rows, hw, dtype_bytes):
    """Pick (row_tile, hw_tile) for streaming the (rows, hw) reduction."""
    sub = {4: 8, 2: 16, 1: 32}.get(dtype_bytes, 8)   # sublane packing per dtype
    per_buf_bytes = 8 * 1024 * 1024                  # one of the 2 pipeline buffers

    # Trailing (lane) tile: full extent when small, else 2048 lanes
    # (8 KiB contiguous per f32 row keeps DMA off the descriptor-bound regime).
    t_hw = hw if hw <= 4096 else 2048

    if rows <= sub:
        return rows, t_hw                            # one full-extent row block

    # Largest sublane-multiple row tile that fits one pipeline buffer.
    tr = max(sub, (per_buf_bytes // (t_hw * dtype_bytes)) // sub * sub)
    tr = min(tr, _round_up(_cdiv(rows, 2), sub))     # >= 2 row blocks (v7x: 2 TCs)
    tr = min(tr, _round_up(rows, sub))               # never exceed padded row count
    return tr, t_hw


def avg_pool_aggregator(x, eps=1e-6):
    """x: (N, C, H, W). Returns (N, C): clamp -> global avg pool -> L2 normalize."""
    n, c, h, w = x.shape
    hw = h * w
    rows = n * c
    x_flat = x.reshape(rows, hw)

    tr, t_hw = _choose_tiles(rows, hw, jnp.dtype(x.dtype).itemsize)

    kernel = functools.partial(
        _pool_sum_kernel, hw=hw, t_hw=t_hw, clamp_eps=float(eps))

    pooled = pl.pallas_call(
        kernel,
        out_shape=jax.ShapeDtypeStruct((rows, 1), jnp.float32),
        grid_spec=pltpu.PrefetchScalarGridSpec(
            num_scalar_prefetch=0,
            grid=(pl.cdiv(rows, tr), pl.cdiv(hw, t_hw)),
            in_specs=[pl.BlockSpec((tr, t_hw), lambda i, k: (i, k))],
            out_specs=pl.BlockSpec((tr, 1), lambda i, k: (i, 0)),
            scratch_shapes=[pltpu.VMEM((tr, _LANES), jnp.float32)],
        ),
        compiler_params=pltpu.CompilerParams(
            dimension_semantics=("parallel", "arbitrary"),
            # Explicit limit safe on every generation (v7x has only 64 MiB
            # physical VMEM per TC) and comfortably holds the <=16 MiB
            # double-buffered input block plus output/scratch.
            vmem_limit_bytes=40 * 1024 * 1024,
        ),
    )(x_flat)

    # Tiny O(N*C) epilogue in plain JAX: L2-normalize over channels
    # (F.normalize(p=2, dim=1): v / max(||v||_2, 1e-12)).
    v = pooled.reshape(n, c)
    norm = jnp.sqrt(jnp.sum(v * v, axis=1, keepdims=True))
    v = v / jnp.maximum(norm, 1e-12)
    return v.astype(x.dtype)


if __name__ == "__main__":
    key = jax.random.PRNGKey(0)
    # small NCHW input consistent with the module's forward
    x = jax.random.normal(key, (2, 4, 16, 16), dtype=jnp.float32)

    out = avg_pool_aggregator(x, eps=1e-6)
    out = jax.block_until_ready(out)

    # plain-JAX reference (clamp -> global avg pool -> flatten -> L2 norm)
    xc = jnp.maximum(x, 1e-6)
    ref = jnp.mean(xc.reshape(x.shape[0], x.shape[1], -1), axis=-1)
    ref = ref / jnp.maximum(
        jnp.sqrt(jnp.sum(ref * ref, axis=1, keepdims=True)), 1e-12)

    assert out.shape == (x.shape[0], x.shape[1])
    assert jnp.allclose(out, ref, atol=1e-5, rtol=1e-5)

    print("KERNEL_OK")
</pallas_src>

<mosaic_0001>
module attributes {stable_mosaic.version = 11 : i64} {
  func.func @_pool_sum_kernel(%arg0: i32, %arg1: i32, %arg2: memref<8x256xf32, #tpu.memory_space<vmem>>, %arg3: memref<8x1xf32, #tpu.memory_space<vmem>>, %arg4: memref<8x128xf32, #tpu.memory_space<vmem>>) attributes {dimension_semantics = [#tpu.dimension_semantics<parallel>, #tpu.dimension_semantics<arbitrary>], iteration_bounds = array<i64: 1, 1>, scalar_prefetch = 0 : i64, scratch_operands = 1 : i64, tpu.core_type = #tpu.core_type<tc>, window_params = [{transform_indices = @transform_0, window_bounds = array<i64: 8, 256>}, {transform_indices = @transform_1, window_bounds = array<i64: 8, 1>}]} {
    %c0_i32 = arith.constant 0 : i32
    %0 = arith.cmpi eq, %arg1, %c0_i32 : i32
    %1 = arith.extui %0 : i1 to i32
    %c0_i32_0 = arith.constant 0 : i32
    %2 = arith.cmpi ne, %1, %c0_i32_0 : i32
    scf.if %2 {
      %cst_8 = arith.constant 0.000000e+00 : f32
      %15 = vector.broadcast %cst_8 : f32 to vector<8x128xf32>
      %c0_9 = arith.constant 0 : index
      %c0_10 = arith.constant 0 : index
      %16 = vector.load %arg4[%c0_9, %c0_10] : memref<8x128xf32, #tpu.memory_space<vmem>>, vector<8x128xf32>
      tpu.vector_store %arg4[%c0_9, %c0_10], %15 {strides = array<i32>} : memref<8x128xf32, #tpu.memory_space<vmem>>, vector<8x128xf32>,
    } else {
    }
    %c0 = arith.constant 0 : index
    %c0_1 = arith.constant 0 : index
    %3 = vector.load %arg2[%c0, %c0_1] : memref<8x256xf32, #tpu.memory_space<vmem>>, vector<8x256xf32>
    %cst = arith.constant 9.99999997E-7 : f32
    %4 = vector.broadcast %cst : f32 to vector<8x256xf32>
    %5 = arith.maximumf %3, %4 : vector<8x256xf32>
    %c0_2 = arith.constant 0 : index
    %c0_3 = arith.constant 0 : index
    %6 = vector.load %arg4[%c0_2, %c0_3] : memref<8x128xf32, #tpu.memory_space<vmem>>, vector<8x128xf32>
    %7 = vector.extract_strided_slice %5 {offsets = [0, 0], sizes = [8, 128], strides = [1, 1]} : vector<8x256xf32> to vector<8x128xf32>
    %8 = vector.extract_strided_slice %5 {offsets = [0, 128], sizes = [8, 128], strides = [1, 1]} : vector<8x256xf32> to vector<8x128xf32>
    %9 = arith.addf %7, %8 : vector<8x128xf32>
    %10 = arith.addf %6, %9 : vector<8x128xf32>
    %c0_4 = arith.constant 0 : index
    %c0_5 = arith.constant 0 : index
    %11 = vector.load %arg4[%c0_4, %c0_5] : memref<8x128xf32, #tpu.memory_space<vmem>>, vector<8x128xf32>
    tpu.vector_store %arg4[%c0_4, %c0_5], %10 {strides = array<i32>} : memref<8x128xf32, #tpu.memory_space<vmem>>, vector<8x128xf32>,
    %c0_i32_6 = arith.constant 0 : i32
    %12 = arith.cmpi eq, %arg1, %c0_i32_6 : i32
    %13 = arith.extui %12 : i1 to i32
    %c0_i32_7 = arith.constant 0 : i32
    %14 = arith.cmpi ne, %13, %c0_i32_7 : i32
    scf.if %14 {
      %c0_8 = arith.constant 0 : index
      %c0_9 = arith.constant 0 : index
      %15 = vector.load %arg4[%c0_8, %c0_9] : memref<8x128xf32, #tpu.memory_space<vmem>>, vector<8x128xf32>
      %cst_10 = arith.constant dense<0.000000e+00> : vector<8xf32>
      %16 = vector.multi_reduction <add>, %15, %cst_10 [1] : vector<8x128xf32> to vector<8xf32>
      %17 = vector.shape_cast %16 : vector<8xf32> to vector<8x1xf32>
      %cst_11 = arith.constant 3.906250e-03 : f32
      %18 = vector.broadcast %cst_11 : f32 to vector<8x1xf32>
      %19 = arith.mulf %17, %18 : vector<8x1xf32>
      %c0_12 = arith.constant 0 : index
      %c0_13 = arith.constant 0 : index
      %20 = vector.load %arg3[%c0_12, %c0_13] : memref<8x1xf32, #tpu.memory_space<vmem>>, vector<8x1xf32>
      tpu.vector_store %arg3[%c0_12, %c0_13], %19 {strides = array<i32>} : memref<8x1xf32, #tpu.memory_space<vmem>>, vector<8x1xf32>,
    } else {
    }
    return
  }
  func.func @transform_0(%arg0: i32, %arg1: i32) -> (i32, i32) {
    %c0_i32 = arith.constant 0 : i32
    return %arg0, %arg1 : i32, i32
  }
  func.func @transform_1(%arg0: i32, %arg1: i32) -> (i32, i32) {
    %c0_i32 = arith.constant 0 : i32
    %c0_i32_0 = arith.constant 0 : i32
    return %arg0, %c0_i32 : i32, i32
  }
}

</mosaic_0001>

<llo_original>
// kernel: tpu_custom_call.1
$region0: #{tpu_custom_call.1}
  #allocation0 [shape = 'u32[]', space=smem, size = 0x4, offset = 0x4, fixed_abs, tag = 'smem constant byte address 0x4 - core index']
  #allocation1 [shape = 'u32[144,128]{1,0:T(1,128)}', space=vmem, size = 0x12000, scoped, tag = 'internal scratch']
  #allocation2 [shape = 'f32[8,128]{1,0:T(8,128)}', space=vmem, size = 0x1000, scoped, tag = 'scratch operand']
  %s0 = inlined_call_operand.hbm [shape: f32[8,256], index: 0, kind: input, shape index: {}]
  %s1 = inlined_call_operand.vmem [shape: f32[8,1], index: 1, kind: output, shape index: {}]
  %s2 = sld [smem:[#allocation0]]
  $region26: #{tpu_custom_call.1} parent=0
    _
  %s4 = ssub.s32 1, %s2
  %s5 = scalar_select 0, %s4, %s2
  $region1: #{tpu_custom_call.1} parent=0
    #allocation3 [shape = 'u8[8192]{0}', space=vmem, size = 0x2000, scoped, tag = 'input window, operand 0, single buffered']
    #allocation4 [shape = 's32[1]{0}', space=sflag, size = 0x4, scoped, tag = 'scoped memory for tpu_custom_call.1']
    %6 = vsyncpa [#allocation4], 0
    // Predicated region
    $region2: #{tpu_custom_call.1} parent=1 // pred_check
      _
    $region3: #{tpu_custom_call.1} parent=1 // pred_check_branch
      %8 = sbr.rel (0) target = $region5
    $region4: #{tpu_custom_call.1} parent=1 // pred_region
      %s10 = ssub.s32 256, 256
      %11 = vsyncadd [#allocation4], %s10
      %s13 = sshll.u32 [#allocation3], 4
      %s14 = int_to_ptr.vmem [resolvable:$true] %s13
      %16 = dma.hbm_to_vmem [thread:$0]  %s0, 256, %s14, [#allocation4]
    $region5: #{tpu_custom_call.1} parent=1 // pred_fallthru
      _
    // Predicated region
    $region6: #{tpu_custom_call.1} parent=1 // pred_check
      _
    $region7: #{tpu_custom_call.1} parent=1 // pred_check_branch
      %18 = sbr.rel (0) target = $region9
    $region8: #{tpu_custom_call.1} parent=1 // pred_region
      %19 = dma.done [#allocation4], 256
    $region9: #{tpu_custom_call.1} parent=1 // pred_fallthru
      _
    %p20 = scmp.eq.s32.totalorder 0, 0
    // Predicated region
    $region10: #{tpu_custom_call.1} parent=1 // pred_check
      %p21 = pneg %p20
    $region11: #{tpu_custom_call.1} parent=1 // pred_check_branch
      %23 = sbr.rel (%p21) target = $region13
    $region12: #{tpu_custom_call.1} parent=1 // pred_region
      %24 = vst [vmem:[#allocation2] sm:$0xff] 0.0
    $region13: #{tpu_custom_call.1} parent=1 // pred_fallthru
      _
    %v25 = vld [vmem:[#allocation3] sm:$0xff]
    %v26 = vld [vmem:[#allocation3 + $0x8] sm:$0xff]
    %v27 = vmax.f32 %v25, 1e-06
    %v28 = vmax.f32 %v26, 1e-06
    %v29 = vld [vmem:[#allocation2] sm:$0xff]
    %v30 = vadd.f32 %v27, %v28
    %v31 = vadd.f32 %v29, %v30
    %32 = vst [vmem:[#allocation2] sm:$0xff] %v31
    // Predicated region
    $region14: #{tpu_custom_call.1} parent=1 // pred_check
      %p33 = pneg %p20
    $region15: #{tpu_custom_call.1} parent=1 // pred_check_branch
      %35 = sbr.rel (%p33) target = $region17
    $region16: #{tpu_custom_call.1} parent=1 // pred_region
      %v36 = vld [vmem:[#allocation2] sm:$0xff]
      %37 = vadd.xlane.f32.xlu0 %v36
      %v38 = vpop.xlane.xlu0 %37
      %v39 = vmul.f32 %v38, 0.00390625
      %vm40 = vcmask 7168
      %41 = vst.msk [vmem:[%s1] sm:$0xff] %vm40, %v39
    $region17: #{tpu_custom_call.1} parent=1 // pred_fallthru
      _
    // Predicated region
    $region18: #{tpu_custom_call.1} parent=1 // pred_check
      _
    $region19: #{tpu_custom_call.1} parent=1 // pred_check_branch
      %43 = sbr.rel (0) target = $region21
    $region20: #{tpu_custom_call.1} parent=1 // pred_region
      _
    $region21: #{tpu_custom_call.1} parent=1 // pred_fallthru
      _
    // Predicated region
    $region22: #{tpu_custom_call.1} parent=1 // pred_check
      _
    $region23: #{tpu_custom_call.1} parent=1 // pred_check_branch
      %45 = sbr.rel (0) target = $region25
    $region24: #{tpu_custom_call.1} parent=1 // pred_region
      _
    $region25: #{tpu_custom_call.1} parent=1 // pred_fallthru
      _
    %46 = vsyncpa [#allocation4], 1

</llo_original>
